<compile_context>
chip_gen: v7x
topology: tpu7x:2x2x1
jax: 0.10.0
libtpu: 0.0.40
codegen_flags: <defaults>
</compile_context>

<pallas_src>
import functools
import math

import jax
import jax.numpy as jnp
from jax.experimental import pallas as pl
from jax.experimental.pallas import tpu as pltpu


def _layer_norm_kernel(x_ref, g_ref, b_ref, o_ref, *, eps, d):
    # Upcast right after the load: reductions stay in f32 (mandatory on v5e).
    x = x_ref[...].astype(jnp.float32)                       # (TM, D)
    # Row mean (cross-lane reduce -> XLU slot, off the VPU critical path).
    mean = jnp.sum(x, axis=-1, keepdims=True) * jnp.float32(1.0 / d)
    xc = x - mean
    # Unbiased variance (PyTorch x.std() default uses Bessel's correction).
    var = jnp.sum(xc * xc, axis=-1, keepdims=True) * jnp.float32(1.0 / (d - 1))
    # Per-row scalars only: exact sqrt + divide on a (TM, 1) column.
    inv = 1.0 / (jnp.sqrt(var) + jnp.float32(eps))
    g = g_ref[...].astype(jnp.float32)                        # (1, D)
    b = b_ref[...].astype(jnp.float32)                        # (1, D)
    # Cast back to the I/O dtype only at the final store.
    o_ref[...] = ((xc * inv) * g + b).astype(o_ref.dtype)


def _vmem_capacity_bytes():
    try:
        return int(pltpu.get_tpu_info().vmem_capacity_bytes)
    except Exception:
        return 64 * 1024 * 1024          # conservative default (v7x per-TC)


def _round_up(v, m):
    return -(-v // m) * m


def layer_norm(x, a_2, b_2, *, eps=1e-6):
    """x: (..., D); a_2, b_2: (D,). Returns same shape and dtype as x."""
    orig_shape = x.shape
    d = int(orig_shape[-1])
    assert d >= 2, "unbiased std (D-1 divisor) needs at least 2 features"
    n = math.prod(orig_shape[:-1]) if len(orig_shape) > 1 else 1

    x2 = x.reshape(n, d)                 # native dtype: no extra HBM pass
    g2 = a_2.reshape(1, d)
    b2 = b_2.reshape(1, d)

    in_bytes = jnp.dtype(x.dtype).itemsize

    # ---- Row-tile sizing -------------------------------------------------
    # Target ~6 MiB of (input + output) HBM traffic per grid step so the
    # ~0.35 us/step grid overhead stays small.
    target_step_bytes = 6 * 1024 * 1024
    rb = max(8, (target_step_bytes // (2 * d * in_bytes)) // 8 * 8)

    # Cap so double-buffered I/O + f32 compute temps fit the per-generation
    # VMEM budget (v7x: 64 MiB physical; v5e/v6e: 128 MiB).
    vmem_cap = _vmem_capacity_bytes()
    vmem_budget = int(vmem_cap * 0.55)
    per_row_vmem = d * (4 * in_bytes + 8)   # 2x dbl-buf (in+out) + ~2 f32 temps
    rb = min(rb, max(8, (vmem_budget // per_row_vmem) // 8 * 8))

    # Keep >=2 grid steps whenever n > 8 so v7x can use both TensorCores.
    rb = min(rb, max(8, _round_up(pl.cdiv(n, 2), 8)))

    grid = (pl.cdiv(n, rb),)

    # vmem_limit: actual need + headroom, bounded by physical capacity.
    vmem_need = rb * per_row_vmem + 4 * d * 4 + (2 << 20)
    vmem_limit = int(min(int(vmem_cap * 0.75), max(32 * 1024 * 1024, vmem_need)))

    kernel = functools.partial(_layer_norm_kernel, eps=float(eps), d=d)

    out = pl.pallas_call(
        kernel,
        out_shape=jax.ShapeDtypeStruct((n, d), x.dtype),
        grid_spec=pltpu.PrefetchScalarGridSpec(
            num_scalar_prefetch=0,
            grid=grid,
            in_specs=[
                pl.BlockSpec((rb, d), lambda i: (i, 0)),    # x rows
                pl.BlockSpec((1, d), lambda i: (0, 0)),     # gamma (resident)
                pl.BlockSpec((1, d), lambda i: (0, 0)),     # beta  (resident)
            ],
            out_specs=pl.BlockSpec((rb, d), lambda i: (i, 0)),
        ),
        compiler_params=pltpu.CompilerParams(
            dimension_semantics=("parallel",),
            vmem_limit_bytes=vmem_limit),
    )(x2, g2, b2)

    return out.reshape(orig_shape)


if __name__ == "__main__":
    EPS = 1e-6
    D = 512

    key = jax.random.PRNGKey(0)
    kx, kg, kb, kx2 = jax.random.split(key, 4)

    # Module initializes a_2=ones, b_2=zeros; perturb to exercise the affine.
    a_2 = jnp.ones((D,), jnp.float32) + 0.1 * jax.random.normal(kg, (D,), jnp.float32)
    b_2 = 0.1 * jax.random.normal(kb, (D,), jnp.float32)

    def ref_fn(xf):
        mean = xf.mean(-1, keepdims=True)
        std = jnp.sqrt(((xf - mean) ** 2).sum(-1, keepdims=True) / (D - 1))
        return a_2 * (xf - mean) / (std + EPS) + b_2

    # Case 1: f32, even row count (batch=2, seq=8, d_model=512).
    x1 = jax.random.normal(kx, (2, 8, D), dtype=jnp.float32)
    out1 = jax.block_until_ready(layer_norm(x1, a_2, b_2, eps=EPS))
    ref1 = ref_fn(x1)
    assert out1.shape == x1.shape and out1.dtype == x1.dtype
    err1 = float(jnp.max(jnp.abs(out1 - ref1)))
    assert jnp.allclose(out1, ref1, atol=1e-5, rtol=1e-5), err1

    # Case 2: bf16 I/O + ragged row count (partial last block, masked store).
    x2 = jax.random.normal(kx2, (2, 7, D), dtype=jnp.float32).astype(jnp.bfloat16)
    out2 = jax.block_until_ready(layer_norm(x2, a_2, b_2, eps=EPS))
    assert out2.shape == x2.shape and out2.dtype == jnp.bfloat16
    ref2 = ref_fn(x2.astype(jnp.float32))
    err2 = float(jnp.max(jnp.abs(out2.astype(jnp.float32) - ref2)))
    assert err2 < 5e-2, err2

    print("KERNEL_OK")
</pallas_src>

<mosaic_0001>
module attributes {stable_mosaic.version = 11 : i64} {
  func.func @_layer_norm_kernel(%arg0: i32, %arg1: memref<8x512xf32, #tpu.memory_space<vmem>>, %arg2: memref<1x512xf32, #tpu.memory_space<vmem>>, %arg3: memref<1x512xf32, #tpu.memory_space<vmem>>, %arg4: memref<8x512xf32, #tpu.memory_space<vmem>>) attributes {dimension_semantics = [#tpu.dimension_semantics<parallel>], iteration_bounds = array<i64: 2>, scalar_prefetch = 0 : i64, scratch_operands = 0 : i64, tpu.core_type = #tpu.core_type<tc>, window_params = [{transform_indices = @transform_0, window_bounds = array<i64: 8, 512>}, {pipeline_mode = #tpu.pipeline_mode<synchronous>, transform_indices = @transform_1, window_bounds = array<i64: 1, 512>}, {pipeline_mode = #tpu.pipeline_mode<synchronous>, transform_indices = @transform_2, window_bounds = array<i64: 1, 512>}, {transform_indices = @transform_3, window_bounds = array<i64: 8, 512>}]} {
    %c0 = arith.constant 0 : index
    %c0_0 = arith.constant 0 : index
    %0 = vector.load %arg1[%c0, %c0_0] : memref<8x512xf32, #tpu.memory_space<vmem>>, vector<8x512xf32>
    %cst = arith.constant dense<0.000000e+00> : vector<8xf32>
    %1 = vector.multi_reduction <add>, %0, %cst [1] : vector<8x512xf32> to vector<8xf32>
    %2 = vector.shape_cast %1 : vector<8xf32> to vector<8x1xf32>
    %cst_1 = arith.constant 0.001953125 : f32
    %3 = vector.broadcast %cst_1 : f32 to vector<8x1xf32>
    %4 = arith.mulf %2, %3 : vector<8x1xf32>
    %5 = vector.broadcast %4 : vector<8x1xf32> to vector<8x512xf32>
    %6 = arith.subf %0, %5 : vector<8x512xf32>
    %7 = arith.mulf %6, %6 : vector<8x512xf32>
    %cst_2 = arith.constant dense<0.000000e+00> : vector<8xf32>
    %8 = vector.multi_reduction <add>, %7, %cst_2 [1] : vector<8x512xf32> to vector<8xf32>
    %9 = vector.shape_cast %8 : vector<8xf32> to vector<8x1xf32>
    %cst_3 = arith.constant 0.00195694715 : f32
    %10 = vector.broadcast %cst_3 : f32 to vector<8x1xf32>
    %11 = arith.mulf %9, %10 : vector<8x1xf32>
    %12 = math.sqrt %11 : vector<8x1xf32>
    %cst_4 = arith.constant 9.99999997E-7 : f32
    %13 = vector.broadcast %cst_4 : f32 to vector<8x1xf32>
    %14 = arith.addf %12, %13 : vector<8x1xf32>
    %cst_5 = arith.constant 1.000000e+00 : f32
    %15 = vector.broadcast %cst_5 : f32 to vector<8x1xf32>
    %16 = arith.divf %15, %14 : vector<8x1xf32>
    %c0_6 = arith.constant 0 : index
    %c0_7 = arith.constant 0 : index
    %17 = vector.load %arg2[%c0_6, %c0_7] : memref<1x512xf32, #tpu.memory_space<vmem>>, vector<1x512xf32>
    %c0_8 = arith.constant 0 : index
    %c0_9 = arith.constant 0 : index
    %18 = vector.load %arg3[%c0_8, %c0_9] : memref<1x512xf32, #tpu.memory_space<vmem>>, vector<1x512xf32>
    %19 = vector.broadcast %16 : vector<8x1xf32> to vector<8x512xf32>
    %20 = arith.mulf %6, %19 : vector<8x512xf32>
    %21 = vector.broadcast %17 : vector<1x512xf32> to vector<8x512xf32>
    %22 = arith.mulf %20, %21 : vector<8x512xf32>
    %23 = vector.broadcast %18 : vector<1x512xf32> to vector<8x512xf32>
    %24 = arith.addf %22, %23 : vector<8x512xf32>
    %c0_10 = arith.constant 0 : index
    %c0_11 = arith.constant 0 : index
    %25 = vector.load %arg4[%c0_10, %c0_11] : memref<8x512xf32, #tpu.memory_space<vmem>>, vector<8x512xf32>
    tpu.vector_store %arg4[%c0_10, %c0_11], %24 {strides = array<i32>} : memref<8x512xf32, #tpu.memory_space<vmem>>, vector<8x512xf32>,
    return
  }
  func.func @transform_0(%arg0: i32) -> (i32, i32) {
    %c0_i32 = arith.constant 0 : i32
    %c0_i32_0 = arith.constant 0 : i32
    return %arg0, %c0_i32 : i32, i32
  }
  func.func @transform_1(%arg0: i32) -> (i32, i32) {
    %c0_i32 = arith.constant 0 : i32
    %c0_i32_0 = arith.constant 0 : i32
    %c0_i32_1 = arith.constant 0 : i32
    return %c0_i32, %c0_i32_0 : i32, i32
  }
  func.func @transform_2(%arg0: i32) -> (i32, i32) {
    %c0_i32 = arith.constant 0 : i32
    %c0_i32_0 = arith.constant 0 : i32
    %c0_i32_1 = arith.constant 0 : i32
    return %c0_i32, %c0_i32_0 : i32, i32
  }
  func.func @transform_3(%arg0: i32) -> (i32, i32) {
    %c0_i32 = arith.constant 0 : i32
    %c0_i32_0 = arith.constant 0 : i32
    return %arg0, %c0_i32 : i32, i32
  }
}

</mosaic_0001>

<llo_original>
// kernel: tpu_custom_call.1
$region0: #{tpu_custom_call.1}
  #allocation0 [shape = 'u32[]', space=smem, size = 0x4, offset = 0x4, fixed_abs, tag = 'smem constant byte address 0x4 - core index']
  #allocation1 [shape = 'u32[144,128]{1,0:T(1,128)}', space=vmem, size = 0x12000, scoped, tag = 'internal scratch']
  %s0 = inlined_call_operand.hbm [shape: f32[16,512], index: 0, kind: input, shape index: {}]
  %s1 = inlined_call_operand.hbm [shape: f32[1,512], index: 1, kind: input, shape index: {}]
  %s2 = inlined_call_operand.vmem [shape: f32[1,512], index: 2, kind: input, shape index: {}]
  %s3 = inlined_call_operand.hbm [shape: f32[16,512], index: 3, kind: output, shape index: {}]
  %s4 = sld [smem:[#allocation0]]
  $region53: #{tpu_custom_call.1} parent=0
    _
  %s6 = ssub.s32 1, %s4
  %s7 = scalar_select 0, %s6, %s4
  $region1: #{tpu_custom_call.1} parent=0
    #allocation2 [shape = 'u8[32768]{0}', space=vmem, size = 0x8000, scoped, tag = 'input window, operand 0']
    #allocation3 [shape = 's32[2]{0}', space=sflag, size = 0x8, scoped, tag = 'scoped memory for tpu_custom_call.1']
    #allocation4 [shape = 's32[2]{0}', space=sflag, size = 0x8, scoped, tag = 'scoped memory for tpu_custom_call.1']
    #allocation5 [shape = 'u8[2048]{0}', space=vmem, size = 0x800, scoped, tag = 'input window, operand 1, single buffered']
    #allocation6 [shape = 's32[1]{0}', space=sflag, size = 0x4, scoped, tag = 'scoped memory for tpu_custom_call.1']
    #allocation7 [shape = 'u8[32768]{0}', space=vmem, size = 0x8000, scoped, tag = 'output window, operand 0']
    %8 = vsyncpa [#allocation3], 0
    %s9 = scalar_lea.sflag [#allocation3], 1
    %10 = vsyncpa %s9, 0
    %11 = vsyncpa [#allocation6], 0
    %12 = vsyncpa [#allocation4], 0
    %s13 = scalar_lea.sflag [#allocation4], 1
    %14 = vsyncpa %s13, 0
    loop: start=0, step=1, limit=4
    $region2: #{tpu_custom_call.1} parent=1 // loop_pre_header
      _
    $region3: #{tpu_custom_call.1} parent=1 // loop_header
      %s16 = sphi 0, %s20
      %p17 = scmp.ge.s32.totalorder %s16, 4
      %s26 = sphi 0, %s28
      %s29 = sphi 0, %s26
      %s30 = sphi 0, %s29
      %s46 = sphi 0, %s30
      %s50 = sphi 0, %s50
      %s52 = sphi 0, %s50
      %s53 = sphi 0, %s52
      %s67 = sphi 0, %s53
      %s71 = sphi 0, %s71
      %s73 = sphi 0, %s71
      %s74 = sphi 0, %s73
      %s88 = sphi 0, %s74
      %s94 = sphi 0, %s96
      %s97 = sphi 0, %s94
      %s98 = sphi 0, %s97
      %s114 = sphi 0, %s98
    $region4: #{tpu_custom_call.1} parent=1 // loop_header_branch
      %19 = sbr.rel (%p17) target = $region8
    $region5: #{tpu_custom_call.1} parent=1 // loop_body
      %s21 = ssub.s32 %s16, 1
      %s22 = ssub.s32 %s16, 2
      %s23 = sadd.s32 %s16, 1
      %s24 = ssub.s32 %s16, %s23
      %p25 = scmp.eq.s32.totalorder %s24, 0
      %s27 = sadd.s32 %s26, 1
      %s28 = scalar_select %p25, %s26, %s27
      %p31 = pneg %p25
      %p32 = scmp.eq.s32.totalorder %s16, 1
      %p33 = por %p31, %p32
      %p34 = scmp.ne.s32.totalorder %s26, %s29
      %p35 = scmp.eq.s32.totalorder %s16, 0
      %p36 = por %p34, %p35
      %p37 = scmp.ne.s32.totalorder %s26, %s29
      %p38 = scmp.eq.s32.totalorder %s21, 1
      %p39 = por %p37, %p38
      %p40 = scmp.ne.s32.totalorder %s29, %s30
      %p41 = scmp.eq.s32.totalorder %s21, 0
      %p42 = por %p40, %p41
      %p43 = scmp.ne.s32.totalorder %s29, %s30
      %p44 = scmp.eq.s32.totalorder %s22, 1
      %p45 = por %p43, %p44
      %p47 = scmp.ne.s32.totalorder %s30, %s46
      %p48 = scmp.eq.s32.totalorder %s22, 0
      %p49 = por %p47, %p48
      %s51 = sadd.s32 %s50, 1
      %p54 = scmp.eq.s32.totalorder %s16, 1
      %p55 = scmp.ne.s32.totalorder %s50, %s52
      %p56 = scmp.eq.s32.totalorder %s16, 0
      %p57 = por %p55, %p56
      %p58 = scmp.ne.s32.totalorder %s50, %s52
      %p59 = scmp.eq.s32.totalorder %s21, 1
      %p60 = por %p58, %p59
      %p61 = scmp.ne.s32.totalorder %s52, %s53
      %p62 = scmp.eq.s32.totalorder %s21, 0
      %p63 = por %p61, %p62
      %p64 = scmp.ne.s32.totalorder %s52, %s53
      %p65 = scmp.eq.s32.totalorder %s22, 1
      %p66 = por %p64, %p65
      %p68 = scmp.ne.s32.totalorder %s53, %s67
      %p69 = scmp.eq.s32.totalorder %s22, 0
      %p70 = por %p68, %p69
      %s72 = sadd.s32 %s71, 1
      %p75 = scmp.eq.s32.totalorder %s16, 1
      %p76 = scmp.ne.s32.totalorder %s71, %s73
      %p77 = scmp.eq.s32.totalorder %s16, 0
      %p78 = por %p76, %p77
      %p79 = scmp.ne.s32.totalorder %s71, %s73
      %p80 = scmp.eq.s32.totalorder %s21, 1
      %p81 = por %p79, %p80
      %p82 = scmp.ne.s32.totalorder %s73, %s74
      %p83 = scmp.eq.s32.totalorder %s21, 0
      %p84 = por %p82, %p83
      %p85 = scmp.ne.s32.totalorder %s73, %s74
      %p86 = scmp.eq.s32.totalorder %s22, 1
      %p87 = por %p85, %p86
      %p89 = scmp.ne.s32.totalorder %s74, %s88
      %p90 = scmp.eq.s32.totalorder %s22, 0
      %p91 = por %p89, %p90
      %s92 = ssub.s32 %s16, %s23
      %p93 = scmp.eq.s32.totalorder %s92, 0
      %s95 = sadd.s32 %s94, 1
      %s96 = scalar_select %p93, %s94, %s95
      %p99 = pneg %p93
      %p100 = scmp.eq.s32.totalorder %s16, 1
      %p101 = por %p99, %p100
      %p102 = scmp.ne.s32.totalorder %s94, %s97
      %p103 = scmp.eq.s32.totalorder %s16, 0
      %p104 = por %p102, %p103
      %p105 = scmp.ne.s32.totalorder %s94, %s97
      %p106 = scmp.eq.s32.totalorder %s21, 1
      %p107 = por %p105, %p106
      %p108 = scmp.ne.s32.totalorder %s97, %s98
      %p109 = scmp.eq.s32.totalorder %s21, 0
      %p110 = por %p108, %p109
      %p111 = scmp.ne.s32.totalorder %s97, %s98
      %p112 = scmp.eq.s32.totalorder %s22, 1
      %p113 = por %p111, %p112
      %p115 = scmp.ne.s32.totalorder %s98, %s114
      %p116 = scmp.eq.s32.totalorder %s22, 0
      %p117 = por %p115, %p116
      %p118 = scmp.le.s32.totalorder 1, %s16
      %p119 = scmp.lt.s32.totalorder %s16, 3
      %p120 = pnand %p118, %p119
      %p121 = pneg %p120
      // Predicated region
      $region9: #{tpu_custom_call.1} parent=5 // pred_check
        _
      $region10: #{tpu_custom_call.1} parent=5 // pred_check_branch
        %123 = sbr.rel (%p120) target = $region12
      $region11: #{tpu_custom_call.1} parent=5 // pred_region
        %s124 = ssub.s32 %s16, 1
        // Predicated region
        $region13: #{tpu_custom_call.1} parent=11 // pred_check
          %p125 = pneg %p63
        $region14: #{tpu_custom_call.1} parent=11 // pred_check_branch
          %127 = sbr.rel (%p125) target = $region16
        $region15: #{tpu_custom_call.1} parent=11 // pred_region
          %s129 = ssub.s32 64, 64
          %130 = vsyncadd [#allocation6], %s129
          %s132 = sshll.u32 [#allocation5], 4
          %s133 = int_to_ptr.vmem [resolvable:$true] %s132
          %135 = dma.hbm_to_vmem [thread:$0]  %s1, 64, %s133, [#allocation6]
        $region16: #{tpu_custom_call.1} parent=11 // pred_fallthru
          _
        // Predicated region
        $region17: #{tpu_custom_call.1} parent=11 // pred_check
          %p136 = pneg %p84
        $region18: #{tpu_custom_call.1} parent=11 // pred_check_branch
          %138 = sbr.rel (%p136) target = $region20
        $region19: #{tpu_custom_call.1} parent=11 // pred_region
          _
        $region20: #{tpu_custom_call.1} parent=11 // pred_fallthru
          _
      $region12: #{tpu_custom_call.1} parent=5 // pred_fallthru
        _
      %p139 = scmp.lt.s32.totalorder %s16, 2
      // Predicated region
      $region21: #{tpu_custom_call.1} parent=5 // pred_check
        %p140 = pneg %p139
      $region22: #{tpu_custom_call.1} parent=5 // pred_check_branch
        %142 = sbr.rel (%p140) target = $region24
      $region23: #{tpu_custom_call.1} parent=5 // pred_region
        // Predicated region
        $region25: #{tpu_custom_call.1} parent=23 // pred_check
          %p143 = pneg %p36
        $region26: #{tpu_custom_call.1} parent=23 // pred_check_branch
          %145 = sbr.rel (%p143) target = $region28
        $region27: #{tpu_custom_call.1} parent=23 // pred_region
          %s146 = sand.u32 %s26, 1
          %s147 = scalar_lea.sflag [#allocation3], %s146
          %s148 = sand.u32 %s26, 1
          %s149 = smul.addr %s148, 32
          %s150 = scalar_lea.vmem [#allocation2], %s149
          %s152 = ssub.s32 512, 512
          %153 = vsyncadd %s147, %s152
          %s154 = smul.addr %s16, 4
          %s155 = smul.addr %s154, 128
          %s156 = scalar_lea.hbm %s0, %s155
          %s158 = sshll.u32 %s150, 4
          %s159 = int_to_ptr.vmem [resolvable:$true] %s158
          %161 = dma.hbm_to_vmem [thread:$0]  %s156, 512, %s159, %s147
        $region28: #{tpu_custom_call.1} parent=23 // pred_fallthru
          _
      $region24: #{tpu_custom_call.1} parent=5 // pred_fallthru
        _
      %p162 = scmp.le.s32.totalorder 1, %s16
      %p163 = scmp.lt.s32.totalorder %s16, 3
      %p164 = pnand %p162, %p163
      %p165 = pneg %p164
      // Predicated region
      $region29: #{tpu_custom_call.1} parent=5 // pred_check
        _
      $region30: #{tpu_custom_call.1} parent=5 // pred_check_branch
        %167 = sbr.rel (%p164) target = $region32
      $region31: #{tpu_custom_call.1} parent=5 // pred_region
        %s168 = ssub.s32 %s16, 1
        %s169 = sand.u32 %s29, 1
        %s170 = scalar_lea.sflag [#allocation3], %s169
        %s171 = sand.u32 %s29, 1
        %s172 = smul.addr %s171, 32
        %s173 = scalar_lea.vmem [#allocation2], %s172
        // Predicated region
        $region33: #{tpu_custom_call.1} parent=31 // pred_check
          %p174 = pneg %p42
        $region34: #{tpu_custom_call.1} parent=31 // pred_check_branch
          %176 = sbr.rel (%p174) target = $region36
        $region35: #{tpu_custom_call.1} parent=31 // pred_region
          %177 = dma.done %s170, 512
        $region36: #{tpu_custom_call.1} parent=31 // pred_fallthru
          _
        // Predicated region
        $region37: #{tpu_custom_call.1} parent=31 // pred_check
          %p178 = pneg %p63
        $region38: #{tpu_custom_call.1} parent=31 // pred_check_branch
          %180 = sbr.rel (%p178) target = $region40
        $region39: #{tpu_custom_call.1} parent=31 // pred_region
          %181 = dma.done [#allocation6], 64
        $region40: #{tpu_custom_call.1} parent=31 // pred_fallthru
          _
        %s182 = sand.u32 %s29, 1
        %s183 = scalar_lea.sflag [#allocation3], %s182
        %s184 = sand.u32 %s29, 1
        %s185 = smul.addr %s184, 32
        %s186 = scalar_lea.vmem [#allocation2], %s185
        %p187 = pneg %p42
        %p188 = pneg %p39
        %p189 = pneg %p63
        %p190 = pneg %p60
        %p191 = pneg %p84
        %p192 = pneg %p81
        %p193 = pneg %p110
        %p194 = pneg %p107
        %s195 = sand.u32 %s97, 1
        %s196 = scalar_lea.sflag [#allocation4], %s195
        %s197 = sand.u32 %s97, 1
        %s198 = smul.addr %s197, 32
        %s199 = scalar_lea.vmem [#allocation7], %s198
        %v200 = vld [vmem:[%s173] sm:$0xff]
        %v201 = vld [vmem:[%s173 + $0x8] sm:$0xff]
        %v202 = vld [vmem:[%s173 + $0x10] sm:$0xff]
        %v203 = vld [vmem:[%s173 + $0x18] sm:$0xff]
        %v204 = vadd.f32 %v200, %v201
        %v205 = vadd.f32 %v204, %v202
        %v206 = vadd.f32 %v205, %v203
        %207 = vadd.xlane.f32.xlu0 %v206
        %v208 = vpop.xlane.xlu0 %207
        %v209 = vmul.f32 %v208, 0.001953125
        %v210 = vsub.f32 %v200, %v209
        %v211 = vsub.f32 %v201, %v209
        %v212 = vsub.f32 %v202, %v209
        %v213 = vsub.f32 %v203, %v209
        %v214 = vmul.f32 %v210, %v210
        %v215 = vmul.f32 %v211, %v211
        %v216 = vmul.f32 %v212, %v212
        %v217 = vmul.f32 %v213, %v213
        %v218 = vadd.f32 %v214, %v215
        %v219 = vadd.f32 %v218, %v216
        %v220 = vadd.f32 %v219, %v217
        %221 = vadd.xlane.f32.xlu0 %v220
        %v222 = vpop.xlane.xlu0 %221
        %v223 = vmul.f32 %v222, 0.0019569471
        %v224 = vrsqrt.pop %v223
        %v225 = vmul.f32 %v223, %v224
        %vm226 = vcmp.eq.f32.partialorder %v223, inf
        %v227 = vsel %vm226, %v223, %v225
        %vm228 = vcmp.eq.f32.partialorder %v223, 0.0
        %v229 = vand.u32 %v223, 2147483648
        %v230 = vsel %vm228, %v229, %v227
        %v231 = vadd.f32 %v230, 1e-06
        %v232 = vrcp.pop %v231
        %v233 = vmul.f32 1.0, %v232
        %v234 = vld [vmem:[#allocation5] sm:$0xf]
        %v235 = vld [vmem:[%s2] sm:$0xf]
        %v236 = vmul.f32 %v210, %v233
        %v237 = vmul.f32 %v211, %v233
        %v238 = vmul.f32 %v212, %v233
        %v239 = vmul.f32 %v213, %v233
        %v241 = vlaneseq
        %v242 = vshrl.u32 %v241, 7
        %v243 = vsub.s32 0, %v242
        %v244 = vrot.slane %v234, %v243
        %v245 = vlaneseq
        %v246 = vshrl.u32 %v245, 7
        %v247 = vsub.s32 1, %v246
        %v248 = vrot.slane %v234, %v247
        %v249 = vlaneseq
        %v250 = vshrl.u32 %v249, 7
        %v251 = vsub.s32 2, %v250
        %v252 = vrot.slane %v234, %v251
        %v253 = vlaneseq
        %v254 = vshrl.u32 %v253, 7
        %v255 = vsub.s32 3, %v254
        %v256 = vrot.slane %v234, %v255
        %v261 = vmul.f32 %v236, %v244
        %v262 = vmul.f32 %v237, %v248
        %v263 = vmul.f32 %v238, %v252
        %v264 = vmul.f32 %v239, %v256
        %v266 = vlaneseq
        %v267 = vshrl.u32 %v266, 7
        %v268 = vsub.s32 0, %v267
        %v269 = vrot.slane %v235, %v268
        %v270 = vlaneseq
        %v271 = vshrl.u32 %v270, 7
        %v272 = vsub.s32 1, %v271
        %v273 = vrot.slane %v235, %v272
        %v274 = vlaneseq
        %v275 = vshrl.u32 %v274, 7
        %v276 = vsub.s32 2, %v275
        %v277 = vrot.slane %v235, %v276
        %v278 = vlaneseq
        %v279 = vshrl.u32 %v278, 7
        %v280 = vsub.s32 3, %v279
        %v281 = vrot.slane %v235, %v280
        %v286 = vadd.f32 %v261, %v269
        %v287 = vadd.f32 %v262, %v273
        %v288 = vadd.f32 %v263, %v277
        %v289 = vadd.f32 %v264, %v281
        %290 = vst [vmem:[%s199] sm:$0xff] %v286
        %291 = vst [vmem:[%s199 + $0x8] sm:$0xff] %v287
        %292 = vst [vmem:[%s199 + $0x10] sm:$0xff] %v288
        %293 = vst [vmem:[%s199 + $0x18] sm:$0xff] %v289
        %s294 = sand.u32 %s97, 1
        %s295 = scalar_lea.sflag [#allocation4], %s294
        %s296 = sand.u32 %s97, 1
        %s297 = smul.addr %s296, 32
        %s298 = scalar_lea.vmem [#allocation7], %s297
        // Predicated region
        $region41: #{tpu_custom_call.1} parent=31 // pred_check
          %p299 = pneg %p107
        $region42: #{tpu_custom_call.1} parent=31 // pred_check_branch
          %301 = sbr.rel (%p299) target = $region44
        $region43: #{tpu_custom_call.1} parent=31 // pred_region
          %s303 = ssub.s32 512, 512
          %304 = vsyncadd %s295, %s303
          %s305 = smul.addr %s21, 4
          %s306 = smul.addr %s305, 128
          %s307 = scalar_lea.hbm %s3, %s306
          %s309 = sshll.u32 %s298, 4
          %s310 = int_to_ptr.vmem [resolvable:$true] %s309
          %312 = dma.vmem_to_hbm [thread:$0]  %s310, 512, %s307, %s295
        $region44: #{tpu_custom_call.1} parent=31 // pred_fallthru
          _
      $region32: #{tpu_custom_call.1} parent=5 // pred_fallthru
        _
      %p313 = scmp.le.s32.totalorder 2, %s16
      // Predicated region
      $region45: #{tpu_custom_call.1} parent=5 // pred_check
        %p314 = pneg %p313
      $region46: #{tpu_custom_call.1} parent=5 // pred_check_branch
        %316 = sbr.rel (%p314) target = $region48
      $region47: #{tpu_custom_call.1} parent=5 // pred_region
        %s317 = ssub.s32 %s16, 2
        // Predicated region
        $region49: #{tpu_custom_call.1} parent=47 // pred_check
          %p318 = pneg %p113
        $region50: #{tpu_custom_call.1} parent=47 // pred_check_branch
          %320 = sbr.rel (%p318) target = $region52
        $region51: #{tpu_custom_call.1} parent=47 // pred_region
          %s321 = sand.u32 %s98, 1
          %s322 = scalar_lea.sflag [#allocation4], %s321
          %s323 = sand.u32 %s98, 1
          %s324 = smul.addr %s323, 32
          %s325 = scalar_lea.vmem [#allocation7], %s324
          %326 = dma.done %s322, 512
        $region52: #{tpu_custom_call.1} parent=47 // pred_fallthru
          _
      $region48: #{tpu_custom_call.1} parent=5 // pred_fallthru
        _
    $region6: #{tpu_custom_call.1} parent=1 // loop_footer
      %s20 = sadd.s32 1, %s16
    $region7: #{tpu_custom_call.1} parent=1 // loop_footer_branch
      %15 = sbr.rel target = $region3
    $region8: #{tpu_custom_call.1} parent=1 // loop_exit
      _
    %327 = vsyncpa [#allocation3], 1
    %s328 = scalar_lea.sflag [#allocation3], 1
    %329 = vsyncpa %s328, 1
    %330 = vsyncpa [#allocation6], 1
    %331 = vsyncpa [#allocation4], 1
    %s332 = scalar_lea.sflag [#allocation4], 1
    %333 = vsyncpa %s332, 1

</llo_original>
